<compile_context>
chip_gen: v7x
topology: tpu7x:2x2x1
jax: 0.10.0
libtpu: 0.0.40
codegen_flags: <defaults>
</compile_context>

<pallas_src>
import functools

import numpy as np
import jax
import jax.numpy as jnp
from jax import lax
from jax.experimental import pallas as pl
from jax.experimental.pallas import tpu as pltpu


def _mbstd_kernel(x_ref, o_ref, *, F, HW, eps):
    """One grid step: TM group members, all G group entries.

    x_ref: (G, TM, C*HW)       VMEM, native dtype
    o_ref: (G, TM, (C+F)*HW)   VMEM, native dtype
    """
    G, TM, CHW = x_ref.shape
    L = CHW // F                 # c * H * W elements per statistics feature
    inv_G = 1.0 / G
    inv_L = 1.0 / L

    zero = jnp.zeros((TM, CHW), jnp.float32)

    # Pass 1: group mean in f32 (only one (TM, CHW) slab live per iteration).
    def _acc_sum(g, acc):
        return acc + x_ref[g].astype(jnp.float32)

    mu = lax.fori_loop(0, G, _acc_sum, zero, unroll=True) * inv_G

    # Pass 2: centered second moment (two-pass variance for precision).
    def _acc_sq(g, acc):
        d = x_ref[g].astype(jnp.float32) - mu
        return acc + d * d

    var = lax.fori_loop(0, G, _acc_sq, zero, unroll=True) * inv_G
    std = jnp.sqrt(var + jnp.float32(eps))                    # (TM, CHW) f32

    # Mean over (c, H, W) per feature: contiguous lane slice + lane reduce;
    # no (F, c) sublane relayout. F is tiny (1 or 2), unrolled in Python.
    cols = []
    for f in range(F):
        sf = jnp.sum(std[:, f * L:(f + 1) * L], axis=-1, keepdims=True) * inv_L
        cols.append(jnp.broadcast_to(sf, (TM, HW)).astype(o_ref.dtype))
    y = cols[0] if F == 1 else jnp.concatenate(cols, axis=-1)  # (TM, F*HW)

    # Fused passthrough + concat: one lane-dense row store per group member.
    # Passthrough is stored in the native dtype (no f32 round trip).
    def _store(g, carry):
        o_ref[g] = jnp.concatenate([x_ref[g], y], axis=-1)
        return carry

    lax.fori_loop(0, G, _store, 0, unroll=True)


def _choose_member_tile(M, per_member_bytes, budget_bytes):
    """Pick TM = group members per grid step.

    TM must divide M and keep the block's second-to-last dim either a multiple
    of the sublane tile (8) or equal to the full dim M.  Prefer the largest TM
    that fits the VMEM budget while leaving >= 2 parallel steps (v7x megacore);
    otherwise the largest TM that fits (single fat step, best for v5e/v6e).
    """
    cands = [d for d in range(1, M + 1) if M % d == 0 and (d == M or d % 8 == 0)]
    min_steps = 2 if M >= 2 else 1
    pref = [d for d in cands
            if d * per_member_bytes <= budget_bytes and M // d >= min_steps]
    if pref:
        return max(pref)
    fit = [d for d in cands if d * per_member_bytes <= budget_bytes]
    if fit:
        return max(fit)
    return min(cands)


def minibatch_std_forward(x, group_size, num_channels=1):
    """JAX/Pallas equivalent of MinibatchStdLayer.forward."""
    N, C, H, W = x.shape
    G = int(min(group_size, N)) if group_size is not None else int(N)
    F = int(num_channels)
    assert N % G == 0, "batch must be divisible by the (clamped) group size"
    assert C % F == 0, "channels must be divisible by num_channels"
    M = N // G
    HW = H * W
    CHW = C * HW
    OHW = (C + F) * HW
    isz = x.dtype.itemsize

    # VMEM budget per group member: double-buffered in/out blocks + f32 temps.
    per_member = 2 * G * (CHW + OHW) * isz + 4 * CHW * 4 + OHW * isz
    budget = 24 * 1024 * 1024
    tm = _choose_member_tile(M, per_member, budget)
    steps = M // tm
    need = tm * per_member
    vmem_limit = int(min(128 * 1024 * 1024, max(48 * 1024 * 1024, 2 * need)))

    # Free row-major reshapes: batch -> (G, M) with g major (matches torch's
    # x.reshape(G, -1, ...)); (C, H, W) flattened onto the lane axis.
    x_r = x.reshape(G, M, CHW)

    kernel = functools.partial(_mbstd_kernel, F=F, HW=HW, eps=1e-8)

    cost = pl.CostEstimate(
        flops=6 * N * CHW,
        transcendentals=M * CHW,                      # sqrt count
        bytes_accessed=N * CHW * isz + N * OHW * isz)

    out = pl.pallas_call(
        kernel,
        out_shape=jax.ShapeDtypeStruct((G, M, OHW), x.dtype),
        grid=(steps,),
        in_specs=[pl.BlockSpec((G, tm, CHW), lambda s: (0, s, 0))],
        out_specs=pl.BlockSpec((G, tm, OHW), lambda s: (0, s, 0)),
        compiler_params=pltpu.CompilerParams(
            dimension_semantics=("parallel",),
            vmem_limit_bytes=vmem_limit),
        cost_estimate=cost,
    )(x_r)

    return out.reshape(N, C + F, H, W)


def _mbstd_ref(x, group_size, num_channels=1):
    """Pure-JAX reference mirroring the PyTorch module."""
    N, C, H, W = x.shape
    G = int(min(group_size, N)) if group_size is not None else int(N)
    F = int(num_channels)
    c = C // F
    y = x.reshape(G, -1, F, c, H, W).astype(jnp.float32)
    y = y - y.mean(axis=0)
    y = jnp.square(y).mean(axis=0)
    y = jnp.sqrt(y + 1e-8)
    y = y.mean(axis=(2, 3, 4))                    # (M, F)
    y = y.reshape(-1, F, 1, 1)
    y = jnp.tile(y, (G, 1, H, W))                 # (N, F, H, W)
    return jnp.concatenate([x, y.astype(x.dtype)], axis=1)


if __name__ == "__main__":
    key = jax.random.PRNGKey(0)
    k1, k2, k3, k4 = jax.random.split(key, 4)

    def _check(x, group_size, num_channels, rtol, atol):
        out = jax.block_until_ready(
            minibatch_std_forward(x, group_size=group_size,
                                  num_channels=num_channels))
        ref = _mbstd_ref(x, group_size=group_size, num_channels=num_channels)
        np.testing.assert_allclose(np.asarray(out.astype(jnp.float32)),
                                   np.asarray(ref.astype(jnp.float32)),
                                   rtol=rtol, atol=atol)

    # Config 1: N=4, C=4, 16x16, group_size=2, F=1 -> G=2, M=2, one fat step.
    x1 = jax.random.normal(k1, (4, 4, 16, 16), dtype=jnp.float32)
    _check(x1, 2, 1, 1e-5, 1e-5)

    # Config 2: N=2, C=4, 16x16, group_size=None (-> G=N), F=2.
    x2 = jax.random.normal(k2, (2, 4, 16, 16), dtype=jnp.float32)
    _check(x2, None, 2, 1e-5, 1e-5)

    # Config 3: realistic 4x4 spatial, N=32, C=8, group_size=2, F=1
    #           -> G=2, M=16, TM=8, two "parallel" grid steps (v7x megacore).
    x3 = jax.random.normal(k3, (32, 8, 4, 4), dtype=jnp.float32)
    _check(x3, 2, 1, 1e-5, 1e-5)

    # Config 4: bf16 input, N=8, C=16, 4x4, group_size=4, F=2
    #           (passthrough stays bf16, statistics computed in f32).
    x4 = jax.random.normal(k4, (8, 16, 4, 4), dtype=jnp.bfloat16)
    _check(x4, 4, 2, 1e-2, 1e-2)

    print("KERNEL_OK")
</pallas_src>

<mosaic_0001>
module attributes {stable_mosaic.version = 11 : i64} {
  func.func @_mbstd_kernel(%arg0: i32, %arg1: memref<2x2x1024xf32, #tpu.memory_space<vmem>>, %arg2: memref<2x2x1280xf32, #tpu.memory_space<vmem>>) attributes {dimension_semantics = [#tpu.dimension_semantics<parallel>], iteration_bounds = array<i64: 1>, scalar_prefetch = 0 : i64, scratch_operands = 0 : i64, tpu.core_type = #tpu.core_type<tc>, window_params = [{transform_indices = @transform_0, window_bounds = array<i64: 2, 2, 1024>}, {transform_indices = @transform_1, window_bounds = array<i64: 2, 2, 1280>}]} {
    %cst = arith.constant 0.000000e+00 : f32
    %0 = vector.broadcast %cst : f32 to vector<2x1024xf32>
    %c0_i32 = arith.constant 0 : i32
    %1 = arith.index_cast %c0_i32 : i32 to index
    %c0 = arith.constant 0 : index
    %c0_0 = arith.constant 0 : index
    %2 = vector.load %arg1[%1, %c0, %c0_0] : memref<2x2x1024xf32, #tpu.memory_space<vmem>>, vector<1x2x1024xf32>
    %3 = vector.shape_cast %2 : vector<1x2x1024xf32> to vector<2x1024xf32>
    %4 = arith.addf %0, %3 : vector<2x1024xf32>
    %c1_i32 = arith.constant 1 : i32
    %5 = arith.index_cast %c1_i32 : i32 to index
    %c0_1 = arith.constant 0 : index
    %c0_2 = arith.constant 0 : index
    %6 = vector.load %arg1[%5, %c0_1, %c0_2] : memref<2x2x1024xf32, #tpu.memory_space<vmem>>, vector<1x2x1024xf32>
    %7 = vector.shape_cast %6 : vector<1x2x1024xf32> to vector<2x1024xf32>
    %8 = arith.addf %4, %7 : vector<2x1024xf32>
    %c2_i32 = arith.constant 2 : i32
    %cst_3 = arith.constant 5.000000e-01 : f32
    %9 = vector.broadcast %cst_3 : f32 to vector<2x1024xf32>
    %10 = arith.mulf %8, %9 : vector<2x1024xf32>
    %c0_i32_4 = arith.constant 0 : i32
    %11 = arith.index_cast %c0_i32_4 : i32 to index
    %c0_5 = arith.constant 0 : index
    %c0_6 = arith.constant 0 : index
    %12 = vector.load %arg1[%11, %c0_5, %c0_6] : memref<2x2x1024xf32, #tpu.memory_space<vmem>>, vector<1x2x1024xf32>
    %13 = vector.shape_cast %12 : vector<1x2x1024xf32> to vector<2x1024xf32>
    %14 = arith.subf %13, %10 : vector<2x1024xf32>
    %15 = arith.mulf %14, %14 : vector<2x1024xf32>
    %16 = arith.addf %0, %15 : vector<2x1024xf32>
    %c1_i32_7 = arith.constant 1 : i32
    %17 = arith.index_cast %c1_i32_7 : i32 to index
    %c0_8 = arith.constant 0 : index
    %c0_9 = arith.constant 0 : index
    %18 = vector.load %arg1[%17, %c0_8, %c0_9] : memref<2x2x1024xf32, #tpu.memory_space<vmem>>, vector<1x2x1024xf32>
    %19 = vector.shape_cast %18 : vector<1x2x1024xf32> to vector<2x1024xf32>
    %20 = arith.subf %19, %10 : vector<2x1024xf32>
    %21 = arith.mulf %20, %20 : vector<2x1024xf32>
    %22 = arith.addf %16, %21 : vector<2x1024xf32>
    %c2_i32_10 = arith.constant 2 : i32
    %cst_11 = arith.constant 5.000000e-01 : f32
    %23 = vector.broadcast %cst_11 : f32 to vector<2x1024xf32>
    %24 = arith.mulf %22, %23 : vector<2x1024xf32>
    %cst_12 = arith.constant 9.99999993E-9 : f32
    %25 = vector.broadcast %cst_12 : f32 to vector<2x1024xf32>
    %26 = arith.addf %24, %25 : vector<2x1024xf32>
    %27 = math.sqrt %26 : vector<2x1024xf32>
    %cst_13 = arith.constant dense<0.000000e+00> : vector<2xf32>
    %28 = vector.multi_reduction <add>, %27, %cst_13 [1] : vector<2x1024xf32> to vector<2xf32>
    %29 = vector.shape_cast %28 : vector<2xf32> to vector<2x1xf32>
    %cst_14 = arith.constant 9.765625E-4 : f32
    %30 = vector.broadcast %cst_14 : f32 to vector<2x1xf32>
    %31 = arith.mulf %29, %30 : vector<2x1xf32>
    %32 = vector.shape_cast %31 : vector<2x1xf32> to vector<2x1xf32>
    %33 = vector.broadcast %32 : vector<2x1xf32> to vector<2x256xf32>
    %c0_i32_15 = arith.constant 0 : i32
    %34 = arith.index_cast %c0_i32_15 : i32 to index
    %c0_16 = arith.constant 0 : index
    %c0_17 = arith.constant 0 : index
    %35 = vector.load %arg1[%34, %c0_16, %c0_17] : memref<2x2x1024xf32, #tpu.memory_space<vmem>>, vector<1x2x1024xf32>
    %36 = vector.shape_cast %35 : vector<1x2x1024xf32> to vector<2x1024xf32>
    %37 = tpu.concatenate %36, %33 in 1 : vector<2x1024xf32>, vector<2x256xf32> -> vector<2x1280xf32>
    %38 = arith.index_cast %c0_i32_15 : i32 to index
    %c0_18 = arith.constant 0 : index
    %c0_19 = arith.constant 0 : index
    %39 = vector.load %arg2[%38, %c0_18, %c0_19] : memref<2x2x1280xf32, #tpu.memory_space<vmem>>, vector<1x2x1280xf32>
    %40 = vector.shape_cast %39 : vector<1x2x1280xf32> to vector<2x1280xf32>
    %41 = vector.shape_cast %37 : vector<2x1280xf32> to vector<1x2x1280xf32>
    tpu.vector_store %arg2[%38, %c0_18, %c0_19], %41 {strides = array<i32>} : memref<2x2x1280xf32, #tpu.memory_space<vmem>>, vector<1x2x1280xf32>,
    %c1_i32_20 = arith.constant 1 : i32
    %42 = arith.index_cast %c1_i32_20 : i32 to index
    %c0_21 = arith.constant 0 : index
    %c0_22 = arith.constant 0 : index
    %43 = vector.load %arg1[%42, %c0_21, %c0_22] : memref<2x2x1024xf32, #tpu.memory_space<vmem>>, vector<1x2x1024xf32>
    %44 = vector.shape_cast %43 : vector<1x2x1024xf32> to vector<2x1024xf32>
    %45 = tpu.concatenate %44, %33 in 1 : vector<2x1024xf32>, vector<2x256xf32> -> vector<2x1280xf32>
    %46 = arith.index_cast %c1_i32_20 : i32 to index
    %c0_23 = arith.constant 0 : index
    %c0_24 = arith.constant 0 : index
    %47 = vector.load %arg2[%46, %c0_23, %c0_24] : memref<2x2x1280xf32, #tpu.memory_space<vmem>>, vector<1x2x1280xf32>
    %48 = vector.shape_cast %47 : vector<1x2x1280xf32> to vector<2x1280xf32>
    %49 = vector.shape_cast %45 : vector<2x1280xf32> to vector<1x2x1280xf32>
    tpu.vector_store %arg2[%46, %c0_23, %c0_24], %49 {strides = array<i32>} : memref<2x2x1280xf32, #tpu.memory_space<vmem>>, vector<1x2x1280xf32>,
    %c2_i32_25 = arith.constant 2 : i32
    return
  }
  func.func @transform_0(%arg0: i32) -> (i32, i32, i32) {
    %c0_i32 = arith.constant 0 : i32
    %c0_i32_0 = arith.constant 0 : i32
    %c0_i32_1 = arith.constant 0 : i32
    return %c0_i32, %arg0, %c0_i32_0 : i32, i32, i32
  }
  func.func @transform_1(%arg0: i32) -> (i32, i32, i32) {
    %c0_i32 = arith.constant 0 : i32
    %c0_i32_0 = arith.constant 0 : i32
    %c0_i32_1 = arith.constant 0 : i32
    return %c0_i32, %arg0, %c0_i32_0 : i32, i32, i32
  }
}

</mosaic_0001>

<llo_original>
// kernel: tpu_custom_call.1
$region0: #{tpu_custom_call.1}
  #allocation0 [shape = 'u32[]', space=smem, size = 0x4, offset = 0x4, fixed_abs, tag = 'smem constant byte address 0x4 - core index']
  #allocation1 [shape = 'u32[144,128]{1,0:T(1,128)}', space=vmem, size = 0x12000, scoped, tag = 'internal scratch']
  %s0 = inlined_call_operand.hbm [shape: f32[2,2,1024], index: 0, kind: input, shape index: {}]
  %s1 = inlined_call_operand.hbm [shape: f32[2,2,1280], index: 1, kind: output, shape index: {}]
  %s2 = sld [smem:[#allocation0]]
  $region18: #{tpu_custom_call.1} parent=0
    _
  %s4 = ssub.s32 1, %s2
  %s5 = scalar_select 0, %s4, %s2
  $region1: #{tpu_custom_call.1} parent=0
    #allocation2 [shape = 'u8[16384]{0}', space=vmem, size = 0x4000, scoped, tag = 'input window, operand 0, single buffered']
    #allocation3 [shape = 's32[1]{0}', space=sflag, size = 0x4, scoped, tag = 'scoped memory for tpu_custom_call.1']
    #allocation4 [shape = 's32[1]{0}', space=sflag, size = 0x4, scoped, tag = 'scoped memory for tpu_custom_call.1']
    #allocation5 [shape = 'u8[20480]{0}', space=vmem, size = 0x5000, scoped, tag = 'output window, operand 0, single buffered']
    %6 = vsyncpa [#allocation3], 0
    %7 = vsyncpa [#allocation4], 0
    // Predicated region
    $region2: #{tpu_custom_call.1} parent=1 // pred_check
      _
    $region3: #{tpu_custom_call.1} parent=1 // pred_check_branch
      %9 = sbr.rel (0) target = $region5
    $region4: #{tpu_custom_call.1} parent=1 // pred_region
      %s11 = ssub.s32 512, 512
      %12 = vsyncadd [#allocation3], %s11
      %s13 = sshll.u32 [#allocation2], 4
      %s14 = int_to_ptr.vmem [resolvable:$true] %s13
      %19 = dma.hbm_to_vmem [thread:$0]  %s0, 512, %s14, [#allocation3], 256, 256, 16
    $region5: #{tpu_custom_call.1} parent=1 // pred_fallthru
      _
    // Predicated region
    $region6: #{tpu_custom_call.1} parent=1 // pred_check
      _
    $region7: #{tpu_custom_call.1} parent=1 // pred_check_branch
      %21 = sbr.rel (0) target = $region9
    $region8: #{tpu_custom_call.1} parent=1 // pred_region
      %22 = dma.done [#allocation3], 512
    $region9: #{tpu_custom_call.1} parent=1 // pred_fallthru
      _
    %v23 = vld [vmem:[#allocation2] sm:$0xff]
    %v24 = vld [vmem:[#allocation2 + $0x8] sm:$0xff]
    %v25 = vadd.f32 %v23, 0.0
    %v26 = vadd.f32 %v24, 0.0
    %s27 = scalar_lea.vmem [#allocation2], 16
    %v28 = vld [vmem:[%s27] sm:$0xff]
    %v29 = vld [vmem:[%s27 + $0x8] sm:$0xff]
    %v30 = vadd.f32 %v25, %v28
    %v31 = vadd.f32 %v26, %v29
    %v32 = vmul.f32 %v30, 0.5
    %v33 = vmul.f32 %v31, 0.5
    %v34 = vsub.f32 %v23, %v32
    %v35 = vsub.f32 %v24, %v33
    %v36 = vmul.f32 %v34, %v34
    %v37 = vmul.f32 %v35, %v35
    %v38 = vadd.f32 %v36, 0.0
    %v39 = vadd.f32 %v37, 0.0
    %v40 = vsub.f32 %v28, %v32
    %v41 = vsub.f32 %v29, %v33
    %v42 = vmul.f32 %v40, %v40
    %v43 = vmul.f32 %v41, %v41
    %v44 = vadd.f32 %v38, %v42
    %v45 = vadd.f32 %v39, %v43
    %v46 = vmul.f32 %v44, 0.5
    %v47 = vmul.f32 %v45, 0.5
    %v48 = vadd.f32 %v46, 1e-08
    %v49 = vadd.f32 %v47, 1e-08
    %v50 = vrsqrt.pop %v48
    %v51 = vmul.f32 %v48, %v50
    %vm52 = vcmp.eq.f32.partialorder %v48, inf
    %v53 = vsel %vm52, %v48, %v51
    %vm54 = vcmp.eq.f32.partialorder %v48, 0.0
    %v55 = vand.u32 %v48, 2147483648
    %v56 = vsel %vm54, %v55, %v53
    %v57 = vrsqrt.pop %v49
    %v58 = vmul.f32 %v49, %v57
    %vm59 = vcmp.eq.f32.partialorder %v49, inf
    %v60 = vsel %vm59, %v49, %v58
    %vm61 = vcmp.eq.f32.partialorder %v49, 0.0
    %v62 = vand.u32 %v49, 2147483648
    %v63 = vsel %vm61, %v62, %v60
    %v66 = vcombine.high %v56, %v56
    %v68 = vunpack.c.l.s4 1983009808
    %v69 = vunpack.c.0.s8 %v68
    %v70 = vlaneseq
    %v71 = vshrl.u32 %v70, 7
    %v72 = vsub.s32 %v69, %v71
    %v73 = vrot.slane %v56, %v72
    %v75 = vunpack.c.l.s4 1983009808
    %v76 = vunpack.c.0.s8 %v75
    %v77 = vlaneseq
    %v78 = vshrl.u32 %v77, 7
    %v79 = vsub.s32 %v76, %v78
    %v80 = vrot.slane %v66, %v79
    %v81 = vcombine.high %v73, %v73
    %v82 = vcombine.high %v80, %v80
    %v83 = vcombine.high %v63, %v63
    %v85 = vunpack.c.l.s4 1983009808
    %v86 = vunpack.c.0.s8 %v85
    %v87 = vlaneseq
    %v88 = vshrl.u32 %v87, 7
    %v89 = vsub.s32 %v86, %v88
    %v90 = vrot.slane %v63, %v89
    %v92 = vunpack.c.l.s4 1983009808
    %v93 = vunpack.c.0.s8 %v92
    %v94 = vlaneseq
    %v95 = vshrl.u32 %v94, 7
    %v96 = vsub.s32 %v93, %v95
    %v97 = vrot.slane %v83, %v96
    %v98 = vcombine.high %v90, %v90
    %v99 = vcombine.high %v97, %v97
    %vm108 = vcmask 1041408
    %v109 = vsel %vm108, %v73, 0.0
    %v110 = vsel %vm108, %v81, 0.0
    %v111 = vadd.f32 %v109, %v110
    %v112 = vsel %vm108, %v80, 0.0
    %v113 = vadd.f32 %v111, %v112
    %v114 = vsel %vm108, %v82, 0.0
    %v115 = vadd.f32 %v113, %v114
    %v116 = vsel %vm108, %v90, 0.0
    %v117 = vadd.f32 %v115, %v116
    %v118 = vsel %vm108, %v98, 0.0
    %v119 = vadd.f32 %v117, %v118
    %v120 = vsel %vm108, %v97, 0.0
    %v121 = vadd.f32 %v119, %v120
    %v122 = vsel %vm108, %v99, 0.0
    %v123 = vadd.f32 %v121, %v122
    %124 = vadd.xlane.f32.xlu0 %v123
    %v125 = vpop.xlane.xlu0 %124
    %v126 = vmul.f32 %v125, 0.0009765625
    %v129 = vcombine.high %v23, %v23
    %v131 = vunpack.c.l.s4 1983009808
    %v132 = vunpack.c.0.s8 %v131
    %v133 = vlaneseq
    %v134 = vshrl.u32 %v133, 7
    %v135 = vsub.s32 %v132, %v134
    %v136 = vrot.slane %v23, %v135
    %v138 = vunpack.c.l.s4 1983009808
    %v139 = vunpack.c.0.s8 %v138
    %v140 = vlaneseq
    %v141 = vshrl.u32 %v140, 7
    %v142 = vsub.s32 %v139, %v141
    %v143 = vrot.slane %v129, %v142
    %v144 = vcombine.high %v136, %v136
    %v145 = vcombine.high %v143, %v143
    %v146 = vcombine.high %v24, %v24
    %v148 = vunpack.c.l.s4 1983009808
    %v149 = vunpack.c.0.s8 %v148
    %v150 = vlaneseq
    %v151 = vshrl.u32 %v150, 7
    %v152 = vsub.s32 %v149, %v151
    %v153 = vrot.slane %v24, %v152
    %v155 = vunpack.c.l.s4 1983009808
    %v156 = vunpack.c.0.s8 %v155
    %v157 = vlaneseq
    %v158 = vshrl.u32 %v157, 7
    %v159 = vsub.s32 %v156, %v158
    %v160 = vrot.slane %v146, %v159
    %v161 = vcombine.high %v153, %v153
    %v162 = vcombine.high %v160, %v160
    %v164 = vcombine.low %v136, %v144
    %v165 = vcombine.low %v143, %v145
    %v167 = vunpack.c.l.s4 1983009808
    %v168 = vunpack.c.0.s8 %v167
    %v169 = vlaneseq
    %v170 = vshrl.u32 %v169, 7
    %v171 = vsub.s32 %v168, %v170
    %v172 = vrot.slane %v164, %v171
    %v174 = vunpack.c.l.s4 1983009808
    %v175 = vunpack.c.0.s8 %v174
    %v176 = vlaneseq
    %v177 = vshrl.u32 %v176, 7
    %v178 = vsub.s32 %v175, %v177
    %v179 = vrot.slane %v165, %v178
    %v180 = vcombine.low %v172, %v179
    %v181 = vcombine.low %v153, %v161
    %v182 = vcombine.low %v160, %v162
    %v184 = vunpack.c.l.s4 1983009808
    %v185 = vunpack.c.0.s8 %v184
    %v186 = vlaneseq
    %v187 = vshrl.u32 %v186, 7
    %v188 = vsub.s32 %v185, %v187
    %v189 = vrot.slane %v181, %v188
    %v191 = vunpack.c.l.s4 1983009808
    %v192 = vunpack.c.0.s8 %v191
    %v193 = vlaneseq
    %v194 = vshrl.u32 %v193, 7
    %v195 = vsub.s32 %v192, %v194
    %v196 = vrot.slane %v182, %v195
    %v197 = vcombine.low %v189, %v196
    %v198 = vcombine.low %v126, %v126
    %v200 = vunpack.c.l.s4 1983009808
    %v201 = vunpack.c.0.s8 %v200
    %v202 = vlaneseq
    %v203 = vshrl.u32 %v202, 7
    %v204 = vsub.s32 %v201, %v203
    %v205 = vrot.slane %v198, %v204
    %209 = vst [vmem:[#allocation5] sm:$0xff] %v180
    %210 = vst [vmem:[#allocation5 + $0x8] sm:$0xff] %v197
    %211 = vst [vmem:[#allocation5 + $0x10] sm:$0xf] %v205
    %v212 = vld [vmem:[%s27] sm:$0xff]
    %v213 = vld [vmem:[%s27 + $0x8] sm:$0xff]
    %v216 = vcombine.high %v212, %v212
    %v218 = vunpack.c.l.s4 1983009808
    %v219 = vunpack.c.0.s8 %v218
    %v220 = vlaneseq
    %v221 = vshrl.u32 %v220, 7
    %v222 = vsub.s32 %v219, %v221
    %v223 = vrot.slane %v212, %v222
    %v225 = vunpack.c.l.s4 1983009808
    %v226 = vunpack.c.0.s8 %v225
    %v227 = vlaneseq
    %v228 = vshrl.u32 %v227, 7
    %v229 = vsub.s32 %v226, %v228
    %v230 = vrot.slane %v216, %v229
    %v231 = vcombine.high %v223, %v223
    %v232 = vcombine.high %v230, %v230
    %v233 = vcombine.high %v213, %v213
    %v235 = vunpack.c.l.s4 1983009808
    %v236 = vunpack.c.0.s8 %v235
    %v237 = vlaneseq
    %v238 = vshrl.u32 %v237, 7
    %v239 = vsub.s32 %v236, %v238
    %v240 = vrot.slane %v213, %v239
    %v242 = vunpack.c.l.s4 1983009808
    %v243 = vunpack.c.0.s8 %v242
    %v244 = vlaneseq
    %v245 = vshrl.u32 %v244, 7
    %v246 = vsub.s32 %v243, %v245
    %v247 = vrot.slane %v233, %v246
    %v248 = vcombine.high %v240, %v240
    %v249 = vcombine.high %v247, %v247
    %v250 = vcombine.low %v223, %v231
    %v251 = vcombine.low %v230, %v232
    %v253 = vunpack.c.l.s4 1983009808
    %v254 = vunpack.c.0.s8 %v253
    %v255 = vlaneseq
    %v256 = vshrl.u32 %v255, 7
    %v257 = vsub.s32 %v254, %v256
    %v258 = vrot.slane %v250, %v257
    %v260 = vunpack.c.l.s4 1983009808
    %v261 = vunpack.c.0.s8 %v260
    %v262 = vlaneseq
    %v263 = vshrl.u32 %v262, 7
    %v264 = vsub.s32 %v261, %v263
    %v265 = vrot.slane %v251, %v264
    %v266 = vcombine.low %v258, %v265
    %v267 = vcombine.low %v240, %v248
    %v268 = vcombine.low %v247, %v249
    %v270 = vunpack.c.l.s4 1983009808
    %v271 = vunpack.c.0.s8 %v270
    %v272 = vlaneseq
    %v273 = vshrl.u32 %v272, 7
    %v274 = vsub.s32 %v271, %v273
    %v275 = vrot.slane %v267, %v274
    %v277 = vunpack.c.l.s4 1983009808
    %v278 = vunpack.c.0.s8 %v277
    %v279 = vlaneseq
    %v280 = vshrl.u32 %v279, 7
    %v281 = vsub.s32 %v278, %v280
    %v282 = vrot.slane %v268, %v281
    %v283 = vcombine.low %v275, %v282
    %s286 = scalar_lea.vmem [#allocation5], 20
    %287 = vst [vmem:[%s286] sm:$0xff] %v266
    %288 = vst [vmem:[%s286 + $0x8] sm:$0xff] %v283
    %289 = vst [vmem:[%s286 + $0x10] sm:$0xf] %v205
    // Predicated region
    $region10: #{tpu_custom_call.1} parent=1 // pred_check
      _
    $region11: #{tpu_custom_call.1} parent=1 // pred_check_branch
      %291 = sbr.rel (0) target = $region13
    $region12: #{tpu_custom_call.1} parent=1 // pred_region
      %s293 = ssub.s32 640, 640
      %294 = vsyncadd [#allocation4], %s293
      %s295 = sshll.u32 [#allocation5], 4
      %s296 = int_to_ptr.vmem [resolvable:$true] %s295
      %301 = dma.vmem_to_hbm [thread:$0]  %s296, 640, %s1, [#allocation4], 320, 320, 20
    $region13: #{tpu_custom_call.1} parent=1 // pred_fallthru
      _
    // Predicated region
    $region14: #{tpu_custom_call.1} parent=1 // pred_check
      _
    $region15: #{tpu_custom_call.1} parent=1 // pred_check_branch
      %303 = sbr.rel (0) target = $region17
    $region16: #{tpu_custom_call.1} parent=1 // pred_region
      %304 = dma.done [#allocation4], 640
    $region17: #{tpu_custom_call.1} parent=1 // pred_fallthru
      _
    %305 = vsyncpa [#allocation3], 1
    %306 = vsyncpa [#allocation4], 1

</llo_original>
